<compile_context>
chip_gen: v7x
topology: tpu7x:2x2x1
jax: 0.10.0
libtpu: 0.0.40
codegen_flags: <defaults>
</compile_context>

<pallas_src>
import functools

import jax
import jax.numpy as jnp
from jax.experimental import pallas as pl
from jax.experimental.pallas import tpu as pltpu


# --------------------------------------------------------------------------- #
# Pallas kernel: streaming global avg-pool (as sum) + max-pool over spatial S #
# --------------------------------------------------------------------------- #
def _pool_kernel(x_ref, sum_ref, max_ref, *, valid_lanes, needs_mask):
    # x_ref:   (C, S_TILE)      one batch element, one spatial tile (squeezed b)
    # sum_ref: (1, 1, 1, C) f32 resident output block (running sum)
    # max_ref: (1, 1, 1, C) f32 resident output block (running max)
    s_idx = pl.program_id(2)

    # ---- init accumulators on the first spatial tile of this (b, split) ----
    @pl.when(s_idx == 0)
    def _init():
        sum_ref[...] = jnp.zeros_like(sum_ref)
        max_ref[...] = jnp.full_like(max_ref, -jnp.inf)

    x = x_ref[...].astype(jnp.float32)                      # (C, S_TILE)

    def _accum(xs, xm):
        sum_ref[...] += jnp.sum(xs, axis=-1).reshape(sum_ref.shape)
        max_ref[...] = jnp.maximum(
            max_ref[...], jnp.max(xm, axis=-1).reshape(max_ref.shape))

    if needs_mask:
        # Only the very last global spatial tile is ragged; every other tile
        # takes the unmasked fast path (no iota / compare / select).
        is_last_global = jnp.logical_and(
            pl.program_id(1) == pl.num_programs(1) - 1,
            s_idx == pl.num_programs(2) - 1)

        @pl.when(jnp.logical_not(is_last_global))
        def _interior():
            _accum(x, x)

        @pl.when(is_last_global)
        def _tail():
            # Mask BEFORE accumulation: lanes past S hold undefined block
            # padding (possibly NaN) and must never feed the sum/max.
            lane = jax.lax.broadcasted_iota(jnp.int32, x.shape, dimension=1)
            valid = lane < valid_lanes                      # mask computed once
            _accum(jnp.where(valid, x, 0.0), jnp.where(valid, x, -jnp.inf))
    else:
        _accum(x, x)


# --------------------------------------------------------------------------- #
# Tiling helpers                                                              #
# --------------------------------------------------------------------------- #
def _default_tile_bytes():
    """Per-generation byte budget for one input tile (double-buffered by the
    pipeline).  v5e/v6e have 128 MiB VMEM -> 8 MiB tiles; v7x has 64 MiB ->
    4 MiB tiles.  Either way, 2x tile + slack stays well inside scoped VMEM."""
    try:
        cap = int(pltpu.get_tpu_info().vmem_capacity_bytes)
    except Exception:
        cap = 64 * 1024 * 1024                              # conservative (v7x)
    return (8 << 20) if cap >= (100 << 20) else (4 << 20)


def _choose_tiling(C, S, itemsize, target_tile_bytes):
    """Pick S_TILE strictly by byte budget (no artificial lane cap).
    Returns (S_TILE, num_s_tiles, needs_mask)."""
    row_bytes = C * itemsize
    # Whole spatial extent fits in one tile -> full-extent block (always legal,
    # no 128-divisibility requirement, no masking).
    if S * row_bytes <= target_tile_bytes or S <= 128:
        return S, 1, False
    lanes = (target_tile_bytes // row_bytes) // 128 * 128
    lanes = max(128, lanes)
    s_tile = min(lanes, -(-S // 128) * 128)
    num_s = -(-S // s_tile)
    needs_mask = (S % s_tile) != 0
    return s_tile, num_s, needs_mask


# --------------------------------------------------------------------------- #
# Public wrapper                                                              #
# --------------------------------------------------------------------------- #
def channel_attention_3d(x, w1, b1, w2, b2, *, target_tile_bytes=None):
    """x: (B, C, D, H, W). Weights follow PyTorch Linear convention:
       w1: (hidden, C), b1: (hidden,), w2: (C, hidden), b2: (C,).
       Returns sigmoid channel attention of shape (B, C, 1, 1, 1)."""
    B, C, D, H, W = x.shape
    S = D * H * W
    itemsize = jnp.dtype(x.dtype).itemsize

    if target_tile_bytes is None:
        target_tile_bytes = _default_tile_bytes()

    S_TILE, num_s, needs_mask = _choose_tiling(C, S, itemsize, target_tile_bytes)
    valid_lanes = S - (num_s - 1) * S_TILE      # valid lanes in the final tile

    # 2-way spatial split when the batch axis alone can't feed both v7x
    # TensorCores (B odd / B == 1).  No-op cost on single-TC v5e/v6e.
    nsplit = 2 if (B % 2 == 1 and num_s >= 2 and num_s % 2 == 0) else 1
    num_s_per_split = num_s // nsplit

    x3 = x.reshape(B, C, S)                     # native dtype through the DMA

    kernel = functools.partial(_pool_kernel,
                               valid_lanes=valid_lanes, needs_mask=needs_mask)

    tile_bytes = C * S_TILE * itemsize
    vmem_limit = int(max(16 << 20, min(48 << 20, 2 * tile_bytes + (4 << 20))))

    cost = pl.CostEstimate(
        flops=2 * B * C * S,                    # sum + max over every element
        transcendentals=0,
        bytes_accessed=B * C * S * itemsize + 2 * B * nsplit * C * 4)

    def x_map(b, g, s):
        return (b, 0, g * num_s_per_split + s)

    sum_out, max_out = pl.pallas_call(
        kernel,
        out_shape=(jax.ShapeDtypeStruct((B, nsplit, 1, C), jnp.float32),
                   jax.ShapeDtypeStruct((B, nsplit, 1, C), jnp.float32)),
        grid=(B, nsplit, num_s_per_split),
        in_specs=[pl.BlockSpec((pl.Squeezed(), C, S_TILE), x_map)],
        out_specs=(pl.BlockSpec((1, 1, 1, C), lambda b, g, s: (b, g, 0, 0)),
                   pl.BlockSpec((1, 1, 1, C), lambda b, g, s: (b, g, 0, 0))),
        compiler_params=pltpu.CompilerParams(
            dimension_semantics=("parallel", "parallel", "arbitrary"),
            vmem_limit_bytes=vmem_limit),
        cost_estimate=cost,
    )(x3)

    # ---- combine split partials + tiny MLP/sigmoid epilogue (plain XLA) ----
    # Per review: the (B,2,C)x(C,C/16) MLP is negligible work; running it in
    # XLA removes 4 weight in_specs from the pipeline and keeps the split easy.
    total_sum = jnp.sum(sum_out[:, :, 0, :], axis=1)        # (B, C)
    total_max = jnp.max(max_out[:, :, 0, :], axis=1)        # (B, C)
    avg = total_sum / jnp.float32(S)

    w1f = w1.astype(jnp.float32)
    b1f = b1.astype(jnp.float32)
    w2f = w2.astype(jnp.float32)
    b2f = b2.astype(jnp.float32)

    pooled = jnp.stack([avg, total_max], axis=1)            # (B, 2, C)
    h = jnp.einsum("bpc,hc->bph", pooled, w1f) + b1f
    h = jax.nn.gelu(h, approximate=False)                   # matches torch.nn.GELU()
    y = jnp.einsum("bph,ch->bpc", h, w2f) + b2f
    out = jax.nn.sigmoid(y[:, 0, :] + y[:, 1, :])
    return out.reshape(B, C, 1, 1, 1)


# --------------------------------------------------------------------------- #
# Pure-JAX reference of the PyTorch forward pass                              #
# --------------------------------------------------------------------------- #
def _reference(x, w1, b1, w2, b2):
    B, C = x.shape[0], x.shape[1]
    xf = x.reshape(B, C, -1).astype(jnp.float32)
    avg = jnp.mean(xf, axis=-1)
    mx = jnp.max(xf, axis=-1)

    def mlp(v):
        h = v @ w1.T + b1
        h = jax.nn.gelu(h, approximate=False)
        return h @ w2.T + b2

    out = jax.nn.sigmoid(mlp(avg) + mlp(mx))
    return out.reshape(B, C, 1, 1, 1)


if __name__ == "__main__":
    key = jax.random.PRNGKey(0)

    # ---------------- Test 1: default tiling (single full-extent tile) ------
    B, C, D, H, W = 2, 32, 8, 8, 8
    reduction_ratio = 16
    hidden = max(1, C // reduction_ratio)

    k_x, k_w1, k_b1, k_w2, k_b2, k_x2 = jax.random.split(key, 6)
    x = jax.random.normal(k_x, (B, C, D, H, W), dtype=jnp.float32)
    w1 = jax.random.normal(k_w1, (hidden, C), dtype=jnp.float32) * 0.1
    b1 = jax.random.normal(k_b1, (hidden,), dtype=jnp.float32) * 0.1
    w2 = jax.random.normal(k_w2, (C, hidden), dtype=jnp.float32) * 0.1
    b2 = jax.random.normal(k_b2, (C,), dtype=jnp.float32) * 0.1

    out = jax.block_until_ready(channel_attention_3d(x, w1, b1, w2, b2))
    ref = _reference(x, w1, b1, w2, b2)
    assert out.shape == (B, C, 1, 1, 1)
    assert jnp.allclose(out, ref, atol=1e-5, rtol=1e-5)

    # ---- Test 2: force multi-tile + masked tail + 2-way split (odd batch) --
    B2, C2, D2, H2, W2 = 1, 32, 5, 10, 10        # S = 500 (not /128, not /256)
    x2 = jax.random.normal(k_x2, (B2, C2, D2, H2, W2), dtype=jnp.float32)
    out2 = jax.block_until_ready(
        channel_attention_3d(x2, w1, b1, w2, b2, target_tile_bytes=32 * 1024))
    ref2 = _reference(x2, w1, b1, w2, b2)
    assert out2.shape == (B2, C2, 1, 1, 1)
    assert jnp.allclose(out2, ref2, atol=1e-5, rtol=1e-5)

    print("KERNEL_OK")
</pallas_src>

<mosaic_0001>
module attributes {stable_mosaic.version = 11 : i64} {
  func.func @_pool_kernel(%arg0: i32, %arg1: i32, %arg2: i32, %arg3: memref<1x32x512xf32, #tpu.memory_space<vmem>>, %arg4: memref<1x1x1x32xf32, #tpu.memory_space<vmem>>, %arg5: memref<1x1x1x32xf32, #tpu.memory_space<vmem>>) attributes {dimension_semantics = [#tpu.dimension_semantics<parallel>, #tpu.dimension_semantics<parallel>, #tpu.dimension_semantics<arbitrary>], iteration_bounds = array<i64: 2, 1, 1>, scalar_prefetch = 0 : i64, scratch_operands = 0 : i64, tpu.core_type = #tpu.core_type<tc>, window_params = [{transform_indices = @transform_0, window_bounds = array<i64: 1, 32, 512>}, {transform_indices = @transform_1, window_bounds = array<i64: 1, 1, 1, 32>}, {transform_indices = @transform_2, window_bounds = array<i64: 1, 1, 1, 32>}]} {
    %c0_i32 = arith.constant 0 : i32
    %0 = arith.cmpi eq, %arg2, %c0_i32 : i32
    %1 = arith.extui %0 : i1 to i32
    %c0_i32_0 = arith.constant 0 : i32
    %2 = arith.cmpi ne, %1, %c0_i32_0 : i32
    scf.if %2 {
      %cst_20 = arith.constant 0.000000e+00 : f32
      %15 = vector.broadcast %cst_20 : f32 to vector<1x1x1x32xf32>
      %c0_21 = arith.constant 0 : index
      %c0_22 = arith.constant 0 : index
      %c0_23 = arith.constant 0 : index
      %c0_24 = arith.constant 0 : index
      %16 = vector.load %arg4[%c0_21, %c0_22, %c0_23, %c0_24] : memref<1x1x1x32xf32, #tpu.memory_space<vmem>>, vector<1x1x1x32xf32>
      tpu.vector_store %arg4[%c0_21, %c0_22, %c0_23, %c0_24], %15 {strides = array<i32>} : memref<1x1x1x32xf32, #tpu.memory_space<vmem>>, vector<1x1x1x32xf32>,
      %cst_25 = arith.constant 0xFF800000 : f32
      %17 = vector.broadcast %cst_25 : f32 to vector<1x1x1x32xf32>
      %c0_26 = arith.constant 0 : index
      %c0_27 = arith.constant 0 : index
      %c0_28 = arith.constant 0 : index
      %c0_29 = arith.constant 0 : index
      %18 = vector.load %arg5[%c0_26, %c0_27, %c0_28, %c0_29] : memref<1x1x1x32xf32, #tpu.memory_space<vmem>>, vector<1x1x1x32xf32>
      tpu.vector_store %arg5[%c0_26, %c0_27, %c0_28, %c0_29], %17 {strides = array<i32>} : memref<1x1x1x32xf32, #tpu.memory_space<vmem>>, vector<1x1x1x32xf32>,
    } else {
    }
    %c0 = arith.constant 0 : index
    %c0_1 = arith.constant 0 : index
    %c0_2 = arith.constant 0 : index
    %3 = vector.load %arg3[%c0, %c0_1, %c0_2] : memref<1x32x512xf32, #tpu.memory_space<vmem>>, vector<1x32x512xf32>
    %4 = vector.shape_cast %3 : vector<1x32x512xf32> to vector<32x512xf32>
    %c0_3 = arith.constant 0 : index
    %c0_4 = arith.constant 0 : index
    %c0_5 = arith.constant 0 : index
    %c0_6 = arith.constant 0 : index
    %5 = vector.load %arg4[%c0_3, %c0_4, %c0_5, %c0_6] : memref<1x1x1x32xf32, #tpu.memory_space<vmem>>, vector<1x1x1x32xf32>
    %cst = arith.constant dense<0.000000e+00> : vector<32xf32>
    %6 = vector.multi_reduction <add>, %4, %cst [1] : vector<32x512xf32> to vector<32xf32>
    %7 = vector.shape_cast %6 : vector<32xf32> to vector<1x1x1x32xf32>
    %8 = arith.addf %5, %7 : vector<1x1x1x32xf32>
    %c0_7 = arith.constant 0 : index
    %c0_8 = arith.constant 0 : index
    %c0_9 = arith.constant 0 : index
    %c0_10 = arith.constant 0 : index
    %9 = vector.load %arg4[%c0_7, %c0_8, %c0_9, %c0_10] : memref<1x1x1x32xf32, #tpu.memory_space<vmem>>, vector<1x1x1x32xf32>
    tpu.vector_store %arg4[%c0_7, %c0_8, %c0_9, %c0_10], %8 {strides = array<i32>} : memref<1x1x1x32xf32, #tpu.memory_space<vmem>>, vector<1x1x1x32xf32>,
    %c0_11 = arith.constant 0 : index
    %c0_12 = arith.constant 0 : index
    %c0_13 = arith.constant 0 : index
    %c0_14 = arith.constant 0 : index
    %10 = vector.load %arg5[%c0_11, %c0_12, %c0_13, %c0_14] : memref<1x1x1x32xf32, #tpu.memory_space<vmem>>, vector<1x1x1x32xf32>
    %cst_15 = arith.constant dense<0xFF800000> : vector<32xf32>
    %11 = vector.multi_reduction <maximumf>, %4, %cst_15 [1] : vector<32x512xf32> to vector<32xf32>
    %12 = vector.shape_cast %11 : vector<32xf32> to vector<1x1x1x32xf32>
    %13 = arith.maximumf %10, %12 : vector<1x1x1x32xf32>
    %c0_16 = arith.constant 0 : index
    %c0_17 = arith.constant 0 : index
    %c0_18 = arith.constant 0 : index
    %c0_19 = arith.constant 0 : index
    %14 = vector.load %arg5[%c0_16, %c0_17, %c0_18, %c0_19] : memref<1x1x1x32xf32, #tpu.memory_space<vmem>>, vector<1x1x1x32xf32>
    tpu.vector_store %arg5[%c0_16, %c0_17, %c0_18, %c0_19], %13 {strides = array<i32>} : memref<1x1x1x32xf32, #tpu.memory_space<vmem>>, vector<1x1x1x32xf32>,
    return
  }
  func.func @transform_0(%arg0: i32, %arg1: i32, %arg2: i32) -> (i32, i32, i32) {
    %c1_i32 = arith.constant 1 : i32
    %0 = arith.muli %arg1, %c1_i32 : i32
    %1 = arith.addi %0, %arg2 : i32
    %c0_i32 = arith.constant 0 : i32
    %c0_i32_0 = arith.constant 0 : i32
    return %arg0, %c0_i32, %1 : i32, i32, i32
  }
  func.func @transform_1(%arg0: i32, %arg1: i32, %arg2: i32) -> (i32, i32, i32, i32) {
    %c0_i32 = arith.constant 0 : i32
    %c0_i32_0 = arith.constant 0 : i32
    %c0_i32_1 = arith.constant 0 : i32
    return %arg0, %arg1, %c0_i32, %c0_i32_0 : i32, i32, i32, i32
  }
  func.func @transform_2(%arg0: i32, %arg1: i32, %arg2: i32) -> (i32, i32, i32, i32) {
    %c0_i32 = arith.constant 0 : i32
    %c0_i32_0 = arith.constant 0 : i32
    %c0_i32_1 = arith.constant 0 : i32
    return %arg0, %arg1, %c0_i32, %c0_i32_0 : i32, i32, i32, i32
  }
}

</mosaic_0001>

<llo_original>
// kernel: tpu_custom_call.1
$region0: #{tpu_custom_call.1}
  #allocation0 [shape = 'u32[]', space=smem, size = 0x4, offset = 0x4, fixed_abs, tag = 'smem constant byte address 0x4 - core index']
  #allocation1 [shape = 'u32[144,128]{1,0:T(1,128)}', space=vmem, size = 0x12000, scoped, tag = 'internal scratch']
  %s0 = inlined_call_operand.hbm [shape: f32[2,32,512], index: 0, kind: input, shape index: {}]
  %s1 = inlined_call_operand.hbm [shape: f32[2,1,1,32], index: 1, kind: output, shape index: {0}]
  %s2 = inlined_call_operand.hbm [shape: f32[2,1,1,32], index: 2, kind: output, shape index: {1}]
  %3 = xla_tuple %s1, %s2
  %s4 = sld [smem:[#allocation0]]
  $region53: #{tpu_custom_call.1} parent=0
    _
  %s6 = ssub.s32 1, %s4
  %s7 = scalar_select 0, %s6, %s4
  $region1: #{tpu_custom_call.1} parent=0
    #allocation2 [shape = 'u8[131072]{0}', space=vmem, size = 0x20000, scoped, tag = 'input window, operand 0']
    #allocation3 [shape = 's32[2]{0}', space=sflag, size = 0x8, scoped, tag = 'scoped memory for tpu_custom_call.1']
    #allocation4 [shape = 's32[2]{0}', space=sflag, size = 0x8, scoped, tag = 'scoped memory for tpu_custom_call.1']
    #allocation5 [shape = 'u8[1024]{0}', space=vmem, size = 0x400, scoped, tag = 'output window, operand 0']
    #allocation6 [shape = 'u8[1024]{0}', space=vmem, size = 0x400, scoped, tag = 'output window, operand 1']
    #allocation7 [shape = 's32[2]{0}', space=sflag, size = 0x8, scoped, tag = 'scoped memory for tpu_custom_call.1']
    %8 = vsyncpa [#allocation3], 0
    %s9 = scalar_lea.sflag [#allocation3], 1
    %10 = vsyncpa %s9, 0
    %11 = vsyncpa [#allocation4], 0
    %s12 = scalar_lea.sflag [#allocation4], 1
    %13 = vsyncpa %s12, 0
    %14 = vsyncpa [#allocation7], 0
    %s15 = scalar_lea.sflag [#allocation7], 1
    %16 = vsyncpa %s15, 0
    loop: start=0, step=1, limit=4
    $region2: #{tpu_custom_call.1} parent=1 // loop_pre_header
      _
    $region3: #{tpu_custom_call.1} parent=1 // loop_header
      %s18 = sphi 0, %s22
      %p19 = scmp.ge.s32.totalorder %s18, 4
      %s25 = sphi 0, %s44
      %s26 = sphi 0, %s40
      %s27 = sphi 0, %s36
      %s28 = sphi 0, %s25
      %s29 = sphi 0, %s26
      %s30 = sphi 0, %s27
      %s31 = sphi 0, %s28
      %s32 = sphi 0, %s29
      %s33 = sphi 0, %s30
      %s51 = sphi 0, %s53
      %s54 = sphi 0, %s51
      %s55 = sphi 0, %s54
      %s71 = sphi 0, %s55
      %s79 = sphi 0, %s81
      %s82 = sphi 0, %s79
      %s83 = sphi 0, %s82
      %s99 = sphi 0, %s83
      %s107 = sphi 0, %s109
      %s110 = sphi 0, %s107
      %s111 = sphi 0, %s110
      %s127 = sphi 0, %s111
    $region4: #{tpu_custom_call.1} parent=1 // loop_header_branch
      %21 = sbr.rel (%p19) target = $region8
    $region5: #{tpu_custom_call.1} parent=1 // loop_body
      %s23 = ssub.s32 %s18, 1
      %s24 = ssub.s32 %s18, 2
      %s34 = sadd.s32 1, %s27
      %p35 = scmp.ge.s32.totalorder %s34, 1
      %s36 = scalar_select %p35, 0, %s34
      %s37 = sadd.s32 1, %s26
      %s38 = scalar_select %p35, %s37, %s26
      %p39 = scmp.ge.s32.totalorder %s38, 1
      %s40 = scalar_select %p39, 0, %s38
      %s41 = sadd.s32 1, %s25
      %s42 = scalar_select %p39, %s41, %s25
      %p43 = scmp.ge.s32.totalorder %s42, 2
      %s44 = scalar_select %p43, 0, %s42
      %s45 = sadd.s32 %s26, %s27
      %s46 = sadd.s32 %s40, %s36
      %s47 = ssub.s32 %s25, %s44
      %s48 = ssub.s32 %s45, %s46
      %s49 = sor.u32 %s47, %s48
      %p50 = scmp.eq.s32.totalorder %s49, 0
      %s52 = sadd.s32 %s51, 1
      %s53 = scalar_select %p50, %s51, %s52
      %p56 = pneg %p50
      %p57 = scmp.eq.s32.totalorder %s18, 1
      %p58 = por %p56, %p57
      %p59 = scmp.ne.s32.totalorder %s51, %s54
      %p60 = scmp.eq.s32.totalorder %s18, 0
      %p61 = por %p59, %p60
      %p62 = scmp.ne.s32.totalorder %s51, %s54
      %p63 = scmp.eq.s32.totalorder %s23, 1
      %p64 = por %p62, %p63
      %p65 = scmp.ne.s32.totalorder %s54, %s55
      %p66 = scmp.eq.s32.totalorder %s23, 0
      %p67 = por %p65, %p66
      %p68 = scmp.ne.s32.totalorder %s54, %s55
      %p69 = scmp.eq.s32.totalorder %s24, 1
      %p70 = por %p68, %p69
      %p72 = scmp.ne.s32.totalorder %s55, %s71
      %p73 = scmp.eq.s32.totalorder %s24, 0
      %p74 = por %p72, %p73
      %s75 = ssub.s32 %s25, %s44
      %s76 = ssub.s32 %s26, %s40
      %s77 = sor.u32 %s75, %s76
      %p78 = scmp.eq.s32.totalorder %s77, 0
      %s80 = sadd.s32 %s79, 1
      %s81 = scalar_select %p78, %s79, %s80
      %p84 = pneg %p78
      %p85 = scmp.eq.s32.totalorder %s18, 1
      %p86 = por %p84, %p85
      %p87 = scmp.ne.s32.totalorder %s79, %s82
      %p88 = scmp.eq.s32.totalorder %s18, 0
      %p89 = por %p87, %p88
      %p90 = scmp.ne.s32.totalorder %s79, %s82
      %p91 = scmp.eq.s32.totalorder %s23, 1
      %p92 = por %p90, %p91
      %p93 = scmp.ne.s32.totalorder %s82, %s83
      %p94 = scmp.eq.s32.totalorder %s23, 0
      %p95 = por %p93, %p94
      %p96 = scmp.ne.s32.totalorder %s82, %s83
      %p97 = scmp.eq.s32.totalorder %s24, 1
      %p98 = por %p96, %p97
      %p100 = scmp.ne.s32.totalorder %s83, %s99
      %p101 = scmp.eq.s32.totalorder %s24, 0
      %p102 = por %p100, %p101
      %s103 = ssub.s32 %s25, %s44
      %s104 = ssub.s32 %s26, %s40
      %s105 = sor.u32 %s103, %s104
      %p106 = scmp.eq.s32.totalorder %s105, 0
      %s108 = sadd.s32 %s107, 1
      %s109 = scalar_select %p106, %s107, %s108
      %p112 = pneg %p106
      %p113 = scmp.eq.s32.totalorder %s18, 1
      %p114 = por %p112, %p113
      %p115 = scmp.ne.s32.totalorder %s107, %s110
      %p116 = scmp.eq.s32.totalorder %s18, 0
      %p117 = por %p115, %p116
      %p118 = scmp.ne.s32.totalorder %s107, %s110
      %p119 = scmp.eq.s32.totalorder %s23, 1
      %p120 = por %p118, %p119
      %p121 = scmp.ne.s32.totalorder %s110, %s111
      %p122 = scmp.eq.s32.totalorder %s23, 0
      %p123 = por %p121, %p122
      %p124 = scmp.ne.s32.totalorder %s110, %s111
      %p125 = scmp.eq.s32.totalorder %s24, 1
      %p126 = por %p124, %p125
      %p128 = scmp.ne.s32.totalorder %s111, %s127
      %p129 = scmp.eq.s32.totalorder %s24, 0
      %p130 = por %p128, %p129
      %p131 = scmp.le.s32.totalorder 1, %s18
      %p132 = scmp.lt.s32.totalorder %s18, 3
      %p133 = pnand %p131, %p132
      %p134 = pneg %p133
      // Predicated region
      $region9: #{tpu_custom_call.1} parent=5 // pred_check
        _
      $region10: #{tpu_custom_call.1} parent=5 // pred_check_branch
        %136 = sbr.rel (%p133) target = $region12
      $region11: #{tpu_custom_call.1} parent=5 // pred_region
        %s137 = ssub.s32 %s18, 1
      $region12: #{tpu_custom_call.1} parent=5 // pred_fallthru
        _
      %p138 = scmp.lt.s32.totalorder %s18, 2
      // Predicated region
      $region13: #{tpu_custom_call.1} parent=5 // pred_check
        %p139 = pneg %p138
      $region14: #{tpu_custom_call.1} parent=5 // pred_check_branch
        %141 = sbr.rel (%p139) target = $region16
      $region15: #{tpu_custom_call.1} parent=5 // pred_region
        // Predicated region
        $region17: #{tpu_custom_call.1} parent=15 // pred_check
          %p142 = pneg %p61
        $region18: #{tpu_custom_call.1} parent=15 // pred_check_branch
          %144 = sbr.rel (%p142) target = $region20
        $region19: #{tpu_custom_call.1} parent=15 // pred_region
          %s145 = sand.u32 %s51, 1
          %s146 = scalar_lea.sflag [#allocation3], %s145
          %s147 = sand.u32 %s51, 1
          %s148 = smul.addr %s147, 128
          %s149 = scalar_lea.vmem [#allocation2], %s148
          %s150 = sadd.s32 %s26, %s27
          %s151 = smul.u32 4, %s150
          %s153 = ssub.s32 2048, 2048
          %154 = vsyncadd %s146, %s153
          %s155 = smul.addr %s25, 16
          %s156 = sadd.s32 %s151, %s155
          %s157 = smul.addr %s156, 128
          %s158 = scalar_lea.hbm %s0, %s157
          %s159 = sshll.u32 %s149, 4
          %s160 = int_to_ptr.vmem [resolvable:$true] %s159
          %165 = dma.hbm_to_vmem [thread:$0]  %s158, 2048, %s160, %s146, 512, 512, 32
        $region20: #{tpu_custom_call.1} parent=15 // pred_fallthru
          _
      $region16: #{tpu_custom_call.1} parent=5 // pred_fallthru
        _
      %p166 = scmp.le.s32.totalorder 1, %s18
      %p167 = scmp.lt.s32.totalorder %s18, 3
      %p168 = pnand %p166, %p167
      %p169 = pneg %p168
      // Predicated region
      $region21: #{tpu_custom_call.1} parent=5 // pred_check
        _
      $region22: #{tpu_custom_call.1} parent=5 // pred_check_branch
        %171 = sbr.rel (%p168) target = $region24
      $region23: #{tpu_custom_call.1} parent=5 // pred_region
        %s172 = ssub.s32 %s18, 1
        %s173 = sand.u32 %s54, 1
        %s174 = scalar_lea.sflag [#allocation3], %s173
        %s175 = sand.u32 %s54, 1
        %s176 = smul.addr %s175, 128
        %s177 = scalar_lea.vmem [#allocation2], %s176
        // Predicated region
        $region25: #{tpu_custom_call.1} parent=23 // pred_check
          %p178 = pneg %p67
        $region26: #{tpu_custom_call.1} parent=23 // pred_check_branch
          %180 = sbr.rel (%p178) target = $region28
        $region27: #{tpu_custom_call.1} parent=23 // pred_region
          %181 = dma.done %s174, 2048
        $region28: #{tpu_custom_call.1} parent=23 // pred_fallthru
          _
        %s182 = sand.u32 %s54, 1
        %s183 = scalar_lea.sflag [#allocation3], %s182
        %s184 = sand.u32 %s54, 1
        %s185 = smul.addr %s184, 128
        %s186 = scalar_lea.vmem [#allocation2], %s185
        %p187 = pneg %p67
        %p188 = pneg %p64
        %p189 = pneg %p95
        %p190 = pneg %p92
        %s191 = sand.u32 %s82, 1
        %s192 = scalar_lea.sflag [#allocation4], %s191
        %s193 = sand.u32 %s82, 1
        %s194 = scalar_lea.vmem [#allocation5], %s193
        %p195 = pneg %p123
        %p196 = pneg %p120
        %s197 = sand.u32 %s110, 1
        %s198 = scalar_lea.sflag [#allocation7], %s197
        %s199 = sand.u32 %s110, 1
        %s200 = scalar_lea.vmem [#allocation6], %s199
        %s201 = sadd.s32 %s29, %s30
        %s202 = smul.u32 4, %s201
        %p203 = scmp.eq.s32.totalorder %s30, 0
        // Predicated region
        $region29: #{tpu_custom_call.1} parent=23 // pred_check
          %p204 = pneg %p203
        $region30: #{tpu_custom_call.1} parent=23 // pred_check_branch
          %206 = sbr.rel (%p204) target = $region32
        $region31: #{tpu_custom_call.1} parent=23 // pred_region
          %vm207 = vcmask 253952
          %208 = vst.msk [vmem:[%s194] sm:$0x1] %vm207, 0.0
          %209 = vst.msk [vmem:[%s200] sm:$0x1] %vm207, -inf
        $region32: #{tpu_custom_call.1} parent=23 // pred_fallthru
          _
        %v210 = vld [vmem:[%s177] sm:$0xff]
        %v211 = vld [vmem:[%s177 + $0x8] sm:$0xff]
        %v212 = vld [vmem:[%s177 + $0x10] sm:$0xff]
        %v213 = vld [vmem:[%s177 + $0x18] sm:$0xff]
        %v214 = vld [vmem:[%s177 + $0x20] sm:$0xff]
        %v215 = vld [vmem:[%s177 + $0x28] sm:$0xff]
        %v216 = vld [vmem:[%s177 + $0x30] sm:$0xff]
        %v217 = vld [vmem:[%s177 + $0x38] sm:$0xff]
        %v218 = vld [vmem:[%s177 + $0x40] sm:$0xff]
        %v219 = vld [vmem:[%s177 + $0x48] sm:$0xff]
        %v220 = vld [vmem:[%s177 + $0x50] sm:$0xff]
        %v221 = vld [vmem:[%s177 + $0x58] sm:$0xff]
        %v222 = vld [vmem:[%s177 + $0x60] sm:$0xff]
        %v223 = vld [vmem:[%s177 + $0x68] sm:$0xff]
        %v224 = vld [vmem:[%s177 + $0x70] sm:$0xff]
        %v225 = vld [vmem:[%s177 + $0x78] sm:$0xff]
        %v226 = vld [vmem:[%s194] sm:$0x1]
        %v227 = vadd.f32 %v210, %v211
        %v228 = vadd.f32 %v227, %v212
        %v229 = vadd.f32 %v228, %v213
        %230 = vadd.xlane.f32.xlu0 %v229
        %v231 = vpop.xlane.xlu0 %230
        %v232 = vadd.f32 %v214, %v215
        %v233 = vadd.f32 %v232, %v216
        %v234 = vadd.f32 %v233, %v217
        %235 = vadd.xlane.f32.xlu0 %v234
        %v236 = vpop.xlane.xlu0 %235
        %v237 = vadd.f32 %v218, %v219
        %v238 = vadd.f32 %v237, %v220
        %v239 = vadd.f32 %v238, %v221
        %240 = vadd.xlane.f32.xlu0 %v239
        %v241 = vpop.xlane.xlu0 %240
        %v242 = vadd.f32 %v222, %v223
        %v243 = vadd.f32 %v242, %v224
        %v244 = vadd.f32 %v243, %v225
        %245 = vadd.xlane.f32.xlu0 %v244
        %v246 = vpop.xlane.xlu0 %245
        %v251 = vlaneseq
        %v252 = vshrl.u32 %v251, 7
        %v253 = vsub.s32 0, %v252
        %v254 = vrot.slane %v231, %v253
        %v255 = vlaneseq
        %v256 = vshrl.u32 %v255, 7
        %v257 = vsub.s32 1, %v256
        %v258 = vrot.slane %v231, %v257
        %v259 = vlaneseq
        %v260 = vshrl.u32 %v259, 7
        %v261 = vsub.s32 2, %v260
        %v262 = vrot.slane %v231, %v261
        %v263 = vlaneseq
        %v264 = vshrl.u32 %v263, 7
        %v265 = vsub.s32 3, %v264
        %v266 = vrot.slane %v231, %v265
        %v267 = vlaneseq
        %v268 = vshrl.u32 %v267, 7
        %v269 = vsub.s32 4, %v268
        %v270 = vrot.slane %v231, %v269
        %v271 = vlaneseq
        %v272 = vshrl.u32 %v271, 7
        %v273 = vsub.s32 5, %v272
        %v274 = vrot.slane %v231, %v273
        %v275 = vlaneseq
        %v276 = vshrl.u32 %v275, 7
        %v277 = vsub.s32 6, %v276
        %v278 = vrot.slane %v231, %v277
        %v279 = vlaneseq
        %v280 = vshrl.u32 %v279, 7
        %v281 = vsub.s32 7, %v280
        %v282 = vrot.slane %v231, %v281
        %v283 = vlaneseq
        %v284 = vshrl.u32 %v283, 7
        %v285 = vsub.s32 0, %v284
        %v286 = vrot.slane %v236, %v285
        %v287 = vlaneseq
        %v288 = vshrl.u32 %v287, 7
        %v289 = vsub.s32 1, %v288
        %v290 = vrot.slane %v236, %v289
        %v291 = vlaneseq
        %v292 = vshrl.u32 %v291, 7
        %v293 = vsub.s32 2, %v292
        %v294 = vrot.slane %v236, %v293
        %v295 = vlaneseq
        %v296 = vshrl.u32 %v295, 7
        %v297 = vsub.s32 3, %v296
        %v298 = vrot.slane %v236, %v297
        %v299 = vlaneseq
        %v300 = vshrl.u32 %v299, 7
        %v301 = vsub.s32 4, %v300
        %v302 = vrot.slane %v236, %v301
        %v303 = vlaneseq
        %v304 = vshrl.u32 %v303, 7
        %v305 = vsub.s32 5, %v304
        %v306 = vrot.slane %v236, %v305
        %v307 = vlaneseq
        %v308 = vshrl.u32 %v307, 7
        %v309 = vsub.s32 6, %v308
        %v310 = vrot.slane %v236, %v309
        %v311 = vlaneseq
        %v312 = vshrl.u32 %v311, 7
        %v313 = vsub.s32 7, %v312
        %v314 = vrot.slane %v236, %v313
        %v315 = vlaneseq
        %v316 = vshrl.u32 %v315, 7
        %v317 = vsub.s32 0, %v316
        %v318 = vrot.slane %v241, %v317
        %v319 = vlaneseq
        %v320 = vshrl.u32 %v319, 7
        %v321 = vsub.s32 1, %v320
        %v322 = vrot.slane %v241, %v321
        %v323 = vlaneseq
        %v324 = vshrl.u32 %v323, 7
        %v325 = vsub.s32 2, %v324
        %v326 = vrot.slane %v241, %v325
        %v327 = vlaneseq
        %v328 = vshrl.u32 %v327, 7
        %v329 = vsub.s32 3, %v328
        %v330 = vrot.slane %v241, %v329
        %v331 = vlaneseq
        %v332 = vshrl.u32 %v331, 7
        %v333 = vsub.s32 4, %v332
        %v334 = vrot.slane %v241, %v333
        %v335 = vlaneseq
        %v336 = vshrl.u32 %v335, 7
        %v337 = vsub.s32 5, %v336
        %v338 = vrot.slane %v241, %v337
        %v339 = vlaneseq
        %v340 = vshrl.u32 %v339, 7
        %v341 = vsub.s32 6, %v340
        %v342 = vrot.slane %v241, %v341
        %v343 = vlaneseq
        %v344 = vshrl.u32 %v343, 7
        %v345 = vsub.s32 7, %v344
        %v346 = vrot.slane %v241, %v345
        %v347 = vlaneseq
        %v348 = vshrl.u32 %v347, 7
        %v349 = vsub.s32 0, %v348
        %v350 = vrot.slane %v246, %v349
        %v351 = vlaneseq
        %v352 = vshrl.u32 %v351, 7
        %v353 = vsub.s32 1, %v352
        %v354 = vrot.slane %v246, %v353
        %v355 = vlaneseq
        %v356 = vshrl.u32 %v355, 7
        %v357 = vsub.s32 2, %v356
        %v358 = vrot.slane %v246, %v357
        %v359 = vlaneseq
        %v360 = vshrl.u32 %v359, 7
        %v361 = vsub.s32 3, %v360
        %v362 = vrot.slane %v246, %v361
        %v363 = vlaneseq
        %v364 = vshrl.u32 %v363, 7
        %v365 = vsub.s32 4, %v364
        %v366 = vrot.slane %v246, %v365
        %v367 = vlaneseq
        %v368 = vshrl.u32 %v367, 7
        %v369 = vsub.s32 5, %v368
        %v370 = vrot.slane %v246, %v369
        %v371 = vlaneseq
        %v372 = vshrl.u32 %v371, 7
        %v373 = vsub.s32 6, %v372
        %v374 = vrot.slane %v246, %v373
        %v375 = vlaneseq
        %v376 = vshrl.u32 %v375, 7
        %v377 = vsub.s32 7, %v376
        %v378 = vrot.slane %v246, %v377
        %v379 = vcombine.low %v254, %v258
        %v380 = vcombine.low %v262, %v266
        %v381 = vcombine.low %v270, %v274
        %v382 = vcombine.low %v278, %v282
        %v384 = vunpack.c.l.s4 1966171168
        %v385 = vunpack.c.0.s8 %v384
        %v386 = vlaneseq
        %v387 = vshrl.u32 %v386, 7
        %v388 = vsub.s32 %v385, %v387
        %v389 = vrot.slane %v379, %v388
        %v391 = vunpack.c.l.s4 1966171168
        %v392 = vunpack.c.0.s8 %v391
        %v393 = vlaneseq
        %v394 = vshrl.u32 %v393, 7
        %v395 = vsub.s32 %v392, %v394
        %v396 = vrot.slane %v380, %v395
        %v398 = vunpack.c.l.s4 1966171168
        %v399 = vunpack.c.0.s8 %v398
        %v400 = vlaneseq
        %v401 = vshrl.u32 %v400, 7
        %v402 = vsub.s32 %v399, %v401
        %v403 = vrot.slane %v381, %v402
        %v405 = vunpack.c.l.s4 1966171168
        %v406 = vunpack.c.0.s8 %v405
        %v407 = vlaneseq
        %v408 = vshrl.u32 %v407, 7
        %v409 = vsub.s32 %v406, %v408
        %v410 = vrot.slane %v382, %v409
        %v411 = vcombine.low %v389, %v396
        %v412 = vcombine.low %v403, %v410
        %v414 = vunpack.c.l.s4 1966171168
        %v415 = vunpack.c.0.s8 %v414
        %v416 = vlaneseq
        %v417 = vshrl.u32 %v416, 7
        %v418 = vsub.s32 %v415, %v417
        %v419 = vrot.slane %v411, %v418
        %v421 = vunpack.c.l.s4 1966171168
        %v422 = vunpack.c.0.s8 %v421
        %v423 = vlaneseq
        %v424 = vshrl.u32 %v423, 7
        %v425 = vsub.s32 %v422, %v424
        %v426 = vrot.slane %v412, %v425
        %v427 = vcombine.low %v419, %v426
        %v428 = vcombine.low %v286, %v290
        %v429 = vcombine.low %v294, %v298
        %v430 = vcombine.low %v302, %v306
        %v431 = vcombine.low %v310, %v314
        %v433 = vunpack.c.l.s4 1966171168
        %v434 = vunpack.c.0.s8 %v433
        %v435 = vlaneseq
        %v436 = vshrl.u32 %v435, 7
        %v437 = vsub.s32 %v434, %v436
        %v438 = vrot.slane %v428, %v437
        %v440 = vunpack.c.l.s4 1966171168
        %v441 = vunpack.c.0.s8 %v440
        %v442 = vlaneseq
        %v443 = vshrl.u32 %v442, 7
        %v444 = vsub.s32 %v441, %v443
        %v445 = vrot.slane %v429, %v444
        %v447 = vunpack.c.l.s4 1966171168
        %v448 = vunpack.c.0.s8 %v447
        %v449 = vlaneseq
        %v450 = vshrl.u32 %v449, 7
        %v451 = vsub.s32 %v448, %v450
        %v452 = vrot.slane %v430, %v451
        %v454 = vunpack.c.l.s4 1966171168
        %v455 = vunpack.c.0.s8 %v454
        %v456 = vlaneseq
        %v457 = vshrl.u32 %v456, 7
        %v458 = vsub.s32 %v455, %v457
        %v459 = vrot.slane %v431, %v458
        %v460 = vcombine.low %v438, %v445
        %v461 = vcombine.low %v452, %v459
        %v463 = vunpack.c.l.s4 1966171168
        %v464 = vunpack.c.0.s8 %v463
        %v465 = vlaneseq
        %v466 = vshrl.u32 %v465, 7
        %v467 = vsub.s32 %v464, %v466
        %v468 = vrot.slane %v460, %v467
        %v470 = vunpack.c.l.s4 1966171168
        %v471 = vunpack.c.0.s8 %v470
        %v472 = vlaneseq
        %v473 = vshrl.u32 %v472, 7
        %v474 = vsub.s32 %v471, %v473
        %v475 = vrot.slane %v461, %v474
        %v476 = vcombine.low %v468, %v475
        %v477 = vcombine.low %v318, %v322
        %v478 = vcombine.low %v326, %v330
        %v479 = vcombine.low %v334, %v338
        %v480 = vcombine.low %v342, %v346
        %v482 = vunpack.c.l.s4 1966171168
        %v483 = vunpack.c.0.s8 %v482
        %v484 = vlaneseq
        %v485 = vshrl.u32 %v484, 7
        %v486 = vsub.s32 %v483, %v485
        %v487 = vrot.slane %v477, %v486
        %v489 = vunpack.c.l.s4 1966171168
        %v490 = vunpack.c.0.s8 %v489
        %v491 = vlaneseq
        %v492 = vshrl.u32 %v491, 7
        %v493 = vsub.s32 %v490, %v492
        %v494 = vrot.slane %v478, %v493
        %v496 = vunpack.c.l.s4 1966171168
        %v497 = vunpack.c.0.s8 %v496
        %v498 = vlaneseq
        %v499 = vshrl.u32 %v498, 7
        %v500 = vsub.s32 %v497, %v499
        %v501 = vrot.slane %v479, %v500
        %v503 = vunpack.c.l.s4 1966171168
        %v504 = vunpack.c.0.s8 %v503
        %v505 = vlaneseq
        %v506 = vshrl.u32 %v505, 7
        %v507 = vsub.s32 %v504, %v506
        %v508 = vrot.slane %v480, %v507
        %v509 = vcombine.low %v487, %v494
        %v510 = vcombine.low %v501, %v508
        %v512 = vunpack.c.l.s4 1966171168
        %v513 = vunpack.c.0.s8 %v512
        %v514 = vlaneseq
        %v515 = vshrl.u32 %v514, 7
        %v516 = vsub.s32 %v513, %v515
        %v517 = vrot.slane %v509, %v516
        %v519 = vunpack.c.l.s4 1966171168
        %v520 = vunpack.c.0.s8 %v519
        %v521 = vlaneseq
        %v522 = vshrl.u32 %v521, 7
        %v523 = vsub.s32 %v520, %v522
        %v524 = vrot.slane %v510, %v523
        %v525 = vcombine.low %v517, %v524
        %v526 = vcombine.low %v350, %v354
        %v527 = vcombine.low %v358, %v362
        %v528 = vcombine.low %v366, %v370
        %v529 = vcombine.low %v374, %v378
        %v531 = vunpack.c.l.s4 1966171168
        %v532 = vunpack.c.0.s8 %v531
        %v533 = vlaneseq
        %v534 = vshrl.u32 %v533, 7
        %v535 = vsub.s32 %v532, %v534
        %v536 = vrot.slane %v526, %v535
        %v538 = vunpack.c.l.s4 1966171168
        %v539 = vunpack.c.0.s8 %v538
        %v540 = vlaneseq
        %v541 = vshrl.u32 %v540, 7
        %v542 = vsub.s32 %v539, %v541
        %v543 = vrot.slane %v527, %v542
        %v545 = vunpack.c.l.s4 1966171168
        %v546 = vunpack.c.0.s8 %v545
        %v547 = vlaneseq
        %v548 = vshrl.u32 %v547, 7
        %v549 = vsub.s32 %v546, %v548
        %v550 = vrot.slane %v528, %v549
        %v552 = vunpack.c.l.s4 1966171168
        %v553 = vunpack.c.0.s8 %v552
        %v554 = vlaneseq
        %v555 = vshrl.u32 %v554, 7
        %v556 = vsub.s32 %v553, %v555
        %v557 = vrot.slane %v529, %v556
        %v558 = vcombine.low %v536, %v543
        %v559 = vcombine.low %v550, %v557
        %v561 = vunpack.c.l.s4 1966171168
        %v562 = vunpack.c.0.s8 %v561
        %v563 = vlaneseq
        %v564 = vshrl.u32 %v563, 7
        %v565 = vsub.s32 %v562, %v564
        %v566 = vrot.slane %v558, %v565
        %v568 = vunpack.c.l.s4 1966171168
        %v569 = vunpack.c.0.s8 %v568
        %v570 = vlaneseq
        %v571 = vshrl.u32 %v570, 7
        %v572 = vsub.s32 %v569, %v571
        %v573 = vrot.slane %v559, %v572
        %v574 = vcombine.low %v566, %v573
        %575 = vset.pattern.permute.xlu0 0
        %576 = vperm.xlu0 %575, %v427
        %v577 = vpop.permute.xlu0 %576
        %578 = vset.pattern.permute.xlu0 0
        %579 = vperm.xlu0 %578, %v476
        %v580 = vpop.permute.xlu0 %579
        %581 = vset.pattern.permute.xlu0 0
        %582 = vperm.xlu0 %581, %v525
        %v583 = vpop.permute.xlu0 %582
        %584 = vset.pattern.permute.xlu0 0
        %585 = vperm.xlu0 %584, %v574
        %v586 = vpop.permute.xlu0 %585
        %v587 = vlaneseq
        %v588 = vand.u32 %v587, 127
        %v589 = vlaneseq
        %v590 = vshrl.u32 %v589, 7
        %v591 = vsub.s32 %v588, %v590
        %v592 = vrot.slane %v577, %v591
        %v593 = vadd.s32 %v588, 4294967288
        %v594 = vlaneseq
        %v595 = vshrl.u32 %v594, 7
        %v596 = vsub.s32 %v593, %v595
        %v597 = vrot.slane %v580, %v596
        %vm598 = vcmask 130112
        %v599 = vsel %vm598, %v597, %v592
        %v600 = vadd.s32 %v588, 4294967280
        %v601 = vlaneseq
        %v602 = vshrl.u32 %v601, 7
        %v603 = vsub.s32 %v600, %v602
        %v604 = vrot.slane %v583, %v603
        %vm605 = vcmask 195712
        %v606 = vsel %vm605, %v604, %v599
        %v607 = vadd.s32 %v588, 4294967272
        %v608 = vlaneseq
        %v609 = vshrl.u32 %v608, 7
        %v610 = vsub.s32 %v607, %v609
        %v611 = vrot.slane %v586, %v610
        %vm612 = vcmask 261312
        %v613 = vsel %vm612, %v611, %v606
        %v615 = vunpack.c.l.s4 1966171168
        %v616 = vunpack.c.0.s8 %v615
        %v617 = vlaneseq
        %v618 = vshrl.u32 %v617, 7
        %v619 = vsub.s32 %v616, %v618
        %v620 = vrot.slane %v613, %v619
        %v622 = vunpack.c.l.s4 1966171168
        %v623 = vunpack.c.0.s8 %v622
        %v624 = vlaneseq
        %v625 = vshrl.u32 %v624, 7
        %v626 = vsub.s32 %v623, %v625
        %v627 = vrot.slane %v620, %v626
        %v629 = vadd.f32 %v226, %v627
        %vm630 = vcmask 253952
        %631 = vst.msk [vmem:[%s194] sm:$0x1] %vm630, %v629
        %v632 = vld [vmem:[%s200] sm:$0x1]
        %v633 = vmax.f32 %v210, %v211
        %v634 = vmax.f32 %v633, %v212
        %v635 = vmax.f32 %v634, %v213
        %636 = vmax.xlane.f32.xlu0 %v635
        %v637 = vpop.xlane.xlu0 %636
        %v638 = vmax.f32 %v214, %v215
        %v639 = vmax.f32 %v638, %v216
        %v640 = vmax.f32 %v639, %v217
        %641 = vmax.xlane.f32.xlu0 %v640
        %v642 = vpop.xlane.xlu0 %641
        %v643 = vmax.f32 %v218, %v219
        %v644 = vmax.f32 %v643, %v220
        %v645 = vmax.f32 %v644, %v221
        %646 = vmax.xlane.f32.xlu0 %v645
        %v647 = vpop.xlane.xlu0 %646
        %v648 = vmax.f32 %v222, %v223
        %v649 = vmax.f32 %v648, %v224
        %v650 = vmax.f32 %v649, %v225
        %651 = vmax.xlane.f32.xlu0 %v650
        %v652 = vpop.xlane.xlu0 %651
        %v657 = vlaneseq
        %v658 = vshrl.u32 %v657, 7
        %v659 = vsub.s32 0, %v658
        %v660 = vrot.slane %v637, %v659
        %v661 = vlaneseq
        %v662 = vshrl.u32 %v661, 7
        %v663 = vsub.s32 1, %v662
        %v664 = vrot.slane %v637, %v663
        %v665 = vlaneseq
        %v666 = vshrl.u32 %v665, 7
        %v667 = vsub.s32 2, %v666
        %v668 = vrot.slane %v637, %v667
        %v669 = vlaneseq
        %v670 = vshrl.u32 %v669, 7
        %v671 = vsub.s32 3, %v670
        %v672 = vrot.slane %v637, %v671
        %v673 = vlaneseq
        %v674 = vshrl.u32 %v673, 7
        %v675 = vsub.s32 4, %v674
        %v676 = vrot.slane %v637, %v675
        %v677 = vlaneseq
        %v678 = vshrl.u32 %v677, 7
        %v679 = vsub.s32 5, %v678
        %v680 = vrot.slane %v637, %v679
        %v681 = vlaneseq
        %v682 = vshrl.u32 %v681, 7
        %v683 = vsub.s32 6, %v682
        %v684 = vrot.slane %v637, %v683
        %v685 = vlaneseq
        %v686 = vshrl.u32 %v685, 7
        %v687 = vsub.s32 7, %v686
        %v688 = vrot.slane %v637, %v687
        %v689 = vlaneseq
        %v690 = vshrl.u32 %v689, 7
        %v691 = vsub.s32 0, %v690
        %v692 = vrot.slane %v642, %v691
        %v693 = vlaneseq
        %v694 = vshrl.u32 %v693, 7
        %v695 = vsub.s32 1, %v694
        %v696 = vrot.slane %v642, %v695
        %v697 = vlaneseq
        %v698 = vshrl.u32 %v697, 7
        %v699 = vsub.s32 2, %v698
        %v700 = vrot.slane %v642, %v699
        %v701 = vlaneseq
        %v702 = vshrl.u32 %v701, 7
        %v703 = vsub.s32 3, %v702
        %v704 = vrot.slane %v642, %v703
        %v705 = vlaneseq
        %v706 = vshrl.u32 %v705, 7
        %v707 = vsub.s32 4, %v706
        %v708 = vrot.slane %v642, %v707
        %v709 = vlaneseq
        %v710 = vshrl.u32 %v709, 7
        %v711 = vsub.s32 5, %v710
        %v712 = vrot.slane %v642, %v711
        %v713 = vlaneseq
        %v714 = vshrl.u32 %v713, 7
        %v715 = vsub.s32 6, %v714
        %v716 = vrot.slane %v642, %v715
        %v717 = vlaneseq
        %v718 = vshrl.u32 %v717, 7
        %v719 = vsub.s32 7, %v718
        %v720 = vrot.slane %v642, %v719
        %v721 = vlaneseq
        %v722 = vshrl.u32 %v721, 7
        %v723 = vsub.s32 0, %v722
        %v724 = vrot.slane %v647, %v723
        %v725 = vlaneseq
        %v726 = vshrl.u32 %v725, 7
        %v727 = vsub.s32 1, %v726
        %v728 = vrot.slane %v647, %v727
        %v729 = vlaneseq
        %v730 = vshrl.u32 %v729, 7
        %v731 = vsub.s32 2, %v730
        %v732 = vrot.slane %v647, %v731
        %v733 = vlaneseq
        %v734 = vshrl.u32 %v733, 7
        %v735 = vsub.s32 3, %v734
        %v736 = vrot.slane %v647, %v735
        %v737 = vlaneseq
        %v738 = vshrl.u32 %v737, 7
        %v739 = vsub.s32 4, %v738
        %v740 = vrot.slane %v647, %v739
        %v741 = vlaneseq
        %v742 = vshrl.u32 %v741, 7
        %v743 = vsub.s32 5, %v742
        %v744 = vrot.slane %v647, %v743
        %v745 = vlaneseq
        %v746 = vshrl.u32 %v745, 7
        %v747 = vsub.s32 6, %v746
        %v748 = vrot.slane %v647, %v747
        %v749 = vlaneseq
        %v750 = vshrl.u32 %v749, 7
        %v751 = vsub.s32 7, %v750
        %v752 = vrot.slane %v647, %v751
        %v753 = vlaneseq
        %v754 = vshrl.u32 %v753, 7
        %v755 = vsub.s32 0, %v754
        %v756 = vrot.slane %v652, %v755
        %v757 = vlaneseq
        %v758 = vshrl.u32 %v757, 7
        %v759 = vsub.s32 1, %v758
        %v760 = vrot.slane %v652, %v759
        %v761 = vlaneseq
        %v762 = vshrl.u32 %v761, 7
        %v763 = vsub.s32 2, %v762
        %v764 = vrot.slane %v652, %v763
        %v765 = vlaneseq
        %v766 = vshrl.u32 %v765, 7
        %v767 = vsub.s32 3, %v766
        %v768 = vrot.slane %v652, %v767
        %v769 = vlaneseq
        %v770 = vshrl.u32 %v769, 7
        %v771 = vsub.s32 4, %v770
        %v772 = vrot.slane %v652, %v771
        %v773 = vlaneseq
        %v774 = vshrl.u32 %v773, 7
        %v775 = vsub.s32 5, %v774
        %v776 = vrot.slane %v652, %v775
        %v777 = vlaneseq
        %v778 = vshrl.u32 %v777, 7
        %v779 = vsub.s32 6, %v778
        %v780 = vrot.slane %v652, %v779
        %v781 = vlaneseq
        %v782 = vshrl.u32 %v781, 7
        %v783 = vsub.s32 7, %v782
        %v784 = vrot.slane %v652, %v783
        %v785 = vcombine.low %v660, %v664
        %v786 = vcombine.low %v668, %v672
        %v787 = vcombine.low %v676, %v680
        %v788 = vcombine.low %v684, %v688
        %v790 = vunpack.c.l.s4 1966171168
        %v791 = vunpack.c.0.s8 %v790
        %v792 = vlaneseq
        %v793 = vshrl.u32 %v792, 7
        %v794 = vsub.s32 %v791, %v793
        %v795 = vrot.slane %v785, %v794
        %v797 = vunpack.c.l.s4 1966171168
        %v798 = vunpack.c.0.s8 %v797
        %v799 = vlaneseq
        %v800 = vshrl.u32 %v799, 7
        %v801 = vsub.s32 %v798, %v800
        %v802 = vrot.slane %v786, %v801
        %v804 = vunpack.c.l.s4 1966171168
        %v805 = vunpack.c.0.s8 %v804
        %v806 = vlaneseq
        %v807 = vshrl.u32 %v806, 7
        %v808 = vsub.s32 %v805, %v807
        %v809 = vrot.slane %v787, %v808
        %v811 = vunpack.c.l.s4 1966171168
        %v812 = vunpack.c.0.s8 %v811
        %v813 = vlaneseq
        %v814 = vshrl.u32 %v813, 7
        %v815 = vsub.s32 %v812, %v814
        %v816 = vrot.slane %v788, %v815
        %v817 = vcombine.low %v795, %v802
        %v818 = vcombine.low %v809, %v816
        %v820 = vunpack.c.l.s4 1966171168
        %v821 = vunpack.c.0.s8 %v820
        %v822 = vlaneseq
        %v823 = vshrl.u32 %v822, 7
        %v824 = vsub.s32 %v821, %v823
        %v825 = vrot.slane %v817, %v824
        %v827 = vunpack.c.l.s4 1966171168
        %v828 = vunpack.c.0.s8 %v827
        %v829 = vlaneseq
        %v830 = vshrl.u32 %v829, 7
        %v831 = vsub.s32 %v828, %v830
        %v832 = vrot.slane %v818, %v831
        %v833 = vcombine.low %v825, %v832
        %v834 = vcombine.low %v692, %v696
        %v835 = vcombine.low %v700, %v704
        %v836 = vcombine.low %v708, %v712
        %v837 = vcombine.low %v716, %v720
        %v839 = vunpack.c.l.s4 1966171168
        %v840 = vunpack.c.0.s8 %v839
        %v841 = vlaneseq
        %v842 = vshrl.u32 %v841, 7
        %v843 = vsub.s32 %v840, %v842
        %v844 = vrot.slane %v834, %v843
        %v846 = vunpack.c.l.s4 1966171168
        %v847 = vunpack.c.0.s8 %v846
        %v848 = vlaneseq
        %v849 = vshrl.u32 %v848, 7
        %v850 = vsub.s32 %v847, %v849
        %v851 = vrot.slane %v835, %v850
        %v853 = vunpack.c.l.s4 1966171168
        %v854 = vunpack.c.0.s8 %v853
        %v855 = vlaneseq
        %v856 = vshrl.u32 %v855, 7
        %v857 = vsub.s32 %v854, %v856
        %v858 = vrot.slane %v836, %v857
        %v860 = vunpack.c.l.s4 1966171168
        %v861 = vunpack.c.0.s8 %v860
        %v862 = vlaneseq
        %v863 = vshrl.u32 %v862, 7
        %v864 = vsub.s32 %v861, %v863
        %v865 = vrot.slane %v837, %v864
        %v866 = vcombine.low %v844, %v851
        %v867 = vcombine.low %v858, %v865
        %v869 = vunpack.c.l.s4 1966171168
        %v870 = vunpack.c.0.s8 %v869
        %v871 = vlaneseq
        %v872 = vshrl.u32 %v871, 7
        %v873 = vsub.s32 %v870, %v872
        %v874 = vrot.slane %v866, %v873
        %v876 = vunpack.c.l.s4 1966171168
        %v877 = vunpack.c.0.s8 %v876
        %v878 = vlaneseq
        %v879 = vshrl.u32 %v878, 7
        %v880 = vsub.s32 %v877, %v879
        %v881 = vrot.slane %v867, %v880
        %v882 = vcombine.low %v874, %v881
        %v883 = vcombine.low %v724, %v728
        %v884 = vcombine.low %v732, %v736
        %v885 = vcombine.low %v740, %v744
        %v886 = vcombine.low %v748, %v752
        %v888 = vunpack.c.l.s4 1966171168
        %v889 = vunpack.c.0.s8 %v888
        %v890 = vlaneseq
        %v891 = vshrl.u32 %v890, 7
        %v892 = vsub.s32 %v889, %v891
        %v893 = vrot.slane %v883, %v892
        %v895 = vunpack.c.l.s4 1966171168
        %v896 = vunpack.c.0.s8 %v895
        %v897 = vlaneseq
        %v898 = vshrl.u32 %v897, 7
        %v899 = vsub.s32 %v896, %v898
        %v900 = vrot.slane %v884, %v899
        %v902 = vunpack.c.l.s4 1966171168
        %v903 = vunpack.c.0.s8 %v902
        %v904 = vlaneseq
        %v905 = vshrl.u32 %v904, 7
        %v906 = vsub.s32 %v903, %v905
        %v907 = vrot.slane %v885, %v906
        %v909 = vunpack.c.l.s4 1966171168
        %v910 = vunpack.c.0.s8 %v909
        %v911 = vlaneseq
        %v912 = vshrl.u32 %v911, 7
        %v913 = vsub.s32 %v910, %v912
        %v914 = vrot.slane %v886, %v913
        %v915 = vcombine.low %v893, %v900
        %v916 = vcombine.low %v907, %v914
        %v918 = vunpack.c.l.s4 1966171168
        %v919 = vunpack.c.0.s8 %v918
        %v920 = vlaneseq
        %v921 = vshrl.u32 %v920, 7
        %v922 = vsub.s32 %v919, %v921
        %v923 = vrot.slane %v915, %v922
        %v925 = vunpack.c.l.s4 1966171168
        %v926 = vunpack.c.0.s8 %v925
        %v927 = vlaneseq
        %v928 = vshrl.u32 %v927, 7
        %v929 = vsub.s32 %v926, %v928
        %v930 = vrot.slane %v916, %v929
        %v931 = vcombine.low %v923, %v930
        %v932 = vcombine.low %v756, %v760
        %v933 = vcombine.low %v764, %v768
        %v934 = vcombine.low %v772, %v776
        %v935 = vcombine.low %v780, %v784
        %v937 = vunpack.c.l.s4 1966171168
        %v938 = vunpack.c.0.s8 %v937
        %v939 = vlaneseq
        %v940 = vshrl.u32 %v939, 7
        %v941 = vsub.s32 %v938, %v940
        %v942 = vrot.slane %v932, %v941
        %v944 = vunpack.c.l.s4 1966171168
        %v945 = vunpack.c.0.s8 %v944
        %v946 = vlaneseq
        %v947 = vshrl.u32 %v946, 7
        %v948 = vsub.s32 %v945, %v947
        %v949 = vrot.slane %v933, %v948
        %v951 = vunpack.c.l.s4 1966171168
        %v952 = vunpack.c.0.s8 %v951
        %v953 = vlaneseq
        %v954 = vshrl.u32 %v953, 7
        %v955 = vsub.s32 %v952, %v954
        %v956 = vrot.slane %v934, %v955
        %v958 = vunpack.c.l.s4 1966171168
        %v959 = vunpack.c.0.s8 %v958
        %v960 = vlaneseq
        %v961 = vshrl.u32 %v960, 7
        %v962 = vsub.s32 %v959, %v961
        %v963 = vrot.slane %v935, %v962
        %v964 = vcombine.low %v942, %v949
        %v965 = vcombine.low %v956, %v963
        %v967 = vunpack.c.l.s4 1966171168
        %v968 = vunpack.c.0.s8 %v967
        %v969 = vlaneseq
        %v970 = vshrl.u32 %v969, 7
        %v971 = vsub.s32 %v968, %v970
        %v972 = vrot.slane %v964, %v971
        %v974 = vunpack.c.l.s4 1966171168
        %v975 = vunpack.c.0.s8 %v974
        %v976 = vlaneseq
        %v977 = vshrl.u32 %v976, 7
        %v978 = vsub.s32 %v975, %v977
        %v979 = vrot.slane %v965, %v978
        %v980 = vcombine.low %v972, %v979
        %981 = vset.pattern.permute.xlu0 0
        %982 = vperm.xlu0 %981, %v833
        %v983 = vpop.permute.xlu0 %982
        %984 = vset.pattern.permute.xlu0 0
        %985 = vperm.xlu0 %984, %v882
        %v986 = vpop.permute.xlu0 %985
        %987 = vset.pattern.permute.xlu0 0
        %988 = vperm.xlu0 %987, %v931
        %v989 = vpop.permute.xlu0 %988
        %990 = vset.pattern.permute.xlu0 0
        %991 = vperm.xlu0 %990, %v980
        %v992 = vpop.permute.xlu0 %991
        %v993 = vlaneseq
        %v994 = vshrl.u32 %v993, 7
        %v995 = vsub.s32 %v588, %v994
        %v996 = vrot.slane %v983, %v995
        %v997 = vlaneseq
        %v998 = vshrl.u32 %v997, 7
        %v999 = vsub.s32 %v593, %v998
        %v1000 = vrot.slane %v986, %v999
        %v1001 = vsel %vm598, %v1000, %v996
        %v1002 = vlaneseq
        %v1003 = vshrl.u32 %v1002, 7
        %v1004 = vsub.s32 %v600, %v1003
        %v1005 = vrot.slane %v989, %v1004
        %v1006 = vsel %vm605, %v1005, %v1001
        %v1007 = vlaneseq
        %v1008 = vshrl.u32 %v1007, 7
        %v1009 = vsub.s32 %v607, %v1008
        %v1010 = vrot.slane %v992, %v1009
        %v1011 = vsel %vm612, %v1010, %v1006
        %v1013 = vunpack.c.l.s4 1966171168
        %v1014 = vunpack.c.0.s8 %v1013
        %v1015 = vlaneseq
        %v1016 = vshrl.u32 %v1015, 7
        %v1017 = vsub.s32 %v1014, %v1016
        %v1018 = vrot.slane %v1011, %v1017
        %v1020 = vunpack.c.l.s4 1966171168
        %v1021 = vunpack.c.0.s8 %v1020
        %v1022 = vlaneseq
        %v1023 = vshrl.u32 %v1022, 7
        %v1024 = vsub.s32 %v1021, %v1023
        %v1025 = vrot.slane %v1018, %v1024
        %v1027 = vmax.f32 %v632, %v1025
        %1028 = vst.msk [vmem:[%s200] sm:$0x1] %vm630, %v1027
        %s1029 = sand.u32 %s82, 1
        %s1030 = scalar_lea.sflag [#allocation4], %s1029
        %s1031 = sand.u32 %s82, 1
        %s1032 = scalar_lea.vmem [#allocation5], %s1031
        %s1033 = sand.u32 %s110, 1
        %s1034 = scalar_lea.sflag [#allocation7], %s1033
        %s1035 = sand.u32 %s110, 1
        %s1036 = scalar_lea.vmem [#allocation6], %s1035
        // Predicated region
        $region33: #{tpu_custom_call.1} parent=23 // pred_check
          %p1037 = pneg %p92
        $region34: #{tpu_custom_call.1} parent=23 // pred_check_branch
          %1039 = sbr.rel (%p1037) target = $region36
        $region35: #{tpu_custom_call.1} parent=23 // pred_region
          %s1041 = ssub.s32 16, 16
          %1042 = vsyncadd %s1030, %s1041
          %s1043 = sadd.s32 %s29, %s28
          %s1044 = smul.addr %s1043, 16
          %s1045 = scalar_lea.hbm %s1, %s1044
          %s1047 = sshll.u32 %s1032, 4
          %s1048 = int_to_ptr.vmem [resolvable:$true] %s1047
          %1050 = dma.vmem_to_hbm [thread:$0]  %s1048, 16, %s1045, %s1030
        $region36: #{tpu_custom_call.1} parent=23 // pred_fallthru
          _
        // Predicated region
        $region37: #{tpu_custom_call.1} parent=23 // pred_check
          %p1051 = pneg %p120
        $region38: #{tpu_custom_call.1} parent=23 // pred_check_branch
          %1053 = sbr.rel (%p1051) target = $region40
        $region39: #{tpu_custom_call.1} parent=23 // pred_region
          %s1055 = ssub.s32 16, 16
          %1056 = vsyncadd %s1034, %s1055
          %s1057 = sadd.s32 %s29, %s28
          %s1058 = smul.addr %s1057, 16
          %s1059 = scalar_lea.hbm %s2, %s1058
          %s1061 = sshll.u32 %s1036, 4
          %s1062 = int_to_ptr.vmem [resolvable:$true] %s1061
          %1064 = dma.vmem_to_hbm [thread:$0]  %s1062, 16, %s1059, %s1034
        $region40: #{tpu_custom_call.1} parent=23 // pred_fallthru
          _
      $region24: #{tpu_custom_call.1} parent=5 // pred_fallthru
        _
      %p1065 = scmp.le.s32.totalorder 2, %s18
      // Predicated region
      $region41: #{tpu_custom_call.1} parent=5 // pred_check
        %p1066 = pneg %p1065
      $region42: #{tpu_custom_call.1} parent=5 // pred_check_branch
        %1068 = sbr.rel (%p1066) target = $region44
      $region43: #{tpu_custom_call.1} parent=5 // pred_region
        %s1069 = ssub.s32 %s18, 2
        // Predicated region
        $region45: #{tpu_custom_call.1} parent=43 // pred_check
          %p1070 = pneg %p98
        $region46: #{tpu_custom_call.1} parent=43 // pred_check_branch
          %1072 = sbr.rel (%p1070) target = $region48
        $region47: #{tpu_custom_call.1} parent=43 // pred_region
          %s1073 = sand.u32 %s83, 1
          %s1074 = scalar_lea.sflag [#allocation4], %s1073
          %s1075 = sand.u32 %s83, 1
          %s1076 = scalar_lea.vmem [#allocation5], %s1075
          %1077 = dma.done %s1074, 16
        $region48: #{tpu_custom_call.1} parent=43 // pred_fallthru
          _
        // Predicated region
        $region49: #{tpu_custom_call.1} parent=43 // pred_check
          %p1078 = pneg %p126
        $region50: #{tpu_custom_call.1} parent=43 // pred_check_branch
          %1080 = sbr.rel (%p1078) target = $region52
        $region51: #{tpu_custom_call.1} parent=43 // pred_region
          %s1081 = sand.u32 %s111, 1
          %s1082 = scalar_lea.sflag [#allocation7], %s1081
          %s1083 = sand.u32 %s111, 1
          %s1084 = scalar_lea.vmem [#allocation6], %s1083
          %1085 = dma.done %s1082, 16
        $region52: #{tpu_custom_call.1} parent=43 // pred_fallthru
          _
      $region44: #{tpu_custom_call.1} parent=5 // pred_fallthru
        _
    $region6: #{tpu_custom_call.1} parent=1 // loop_footer
      %s22 = sadd.s32 1, %s18
    $region7: #{tpu_custom_call.1} parent=1 // loop_footer_branch
      %17 = sbr.rel target = $region3
    $region8: #{tpu_custom_call.1} parent=1 // loop_exit
      _
    %1086 = vsyncpa [#allocation3], 1
    %s1087 = scalar_lea.sflag [#allocation3], 1
    %1088 = vsyncpa %s1087, 1
    %1089 = vsyncpa [#allocation4], 1
    %s1090 = scalar_lea.sflag [#allocation4], 1
    %1091 = vsyncpa %s1090, 1
    %1092 = vsyncpa [#allocation7], 1
    %s1093 = scalar_lea.sflag [#allocation7], 1
    %1094 = vsyncpa %s1093, 1

</llo_original>
